<compile_context>
chip_gen: v6e
topology: v6e:2x2x1
jax: 0.10.0
libtpu: 0.0.40
codegen_flags: <defaults>
</compile_context>

<pallas_src>
import functools

import jax
import jax.numpy as jnp
from jax import lax
from jax.experimental import pallas as pl
from jax.experimental.pallas import tpu as pltpu

BETA = 100.0      # cfg.NETWORK.BETA
_LANE = 128       # lane-dense output padding; wrapper slices [..., :3]


def _pose_reg_kernel(valid_ref, x_ref, w_ref, g_ref, c_ref, o_ref,
                     m_sc, l_sc, ax_sc, ay_sc, az_sc):
    """One (batch, N-tile) step of the fused channel-mix + soft-argmax.

    valid_ref : SMEM (B,)  i32   scalar-prefetched validity flags
    x_ref     : VMEM (C, tN)     cube tile for this batch element
    w_ref     : VMEM (J, C)      channel-mix weights, BETA already folded in
    g_ref     : VMEM (3, tN)     batch-invariant voxel offsets, lane-dense
    c_ref     : SMEM (B, 3) f32  per-proposal grid centers
    o_ref     : VMEM (J, 128)    lane-padded output (first 3 lanes used)
    m_sc/l_sc : VMEM (J, 1)      online-softmax running max / running sum
    a*_sc     : VMEM (J, 1)      running (unnormalized) coord numerators x/y/z
    """
    b = pl.program_id(0)
    k = pl.program_id(1)
    nk = pl.num_programs(1)

    @pl.when(valid_ref[b] > 0)
    def _valid_body():
        @pl.when(k == 0)
        def _init():
            m_sc[...] = jnp.full_like(m_sc, -jnp.inf)
            l_sc[...] = jnp.zeros_like(l_sc)
            ax_sc[...] = jnp.zeros_like(ax_sc)
            ay_sc[...] = jnp.zeros_like(ay_sc)
            az_sc[...] = jnp.zeros_like(az_sc)

        # Channel mix on the MXU.  The kernel is mem-bound, so keeping this off
        # the VPU matters most on v6e/v7x where the VALU slot would otherwise
        # bind; the MXU extended slot is idle either way.  HIGHEST precision
        # keeps the beta-scaled softmax exponent at full f32 accuracy
        # (single-pass bf16 would perturb it by ~0.1).
        s = jnp.dot(w_ref[...], x_ref[...],
                    preferred_element_type=jnp.float32,
                    precision=lax.Precision.HIGHEST)            # (J, tN)

        # Online softmax over the voxel (lane) axis; normalization deferred.
        m_prev = m_sc[...]
        m_new = jnp.maximum(m_prev, jnp.max(s, axis=-1, keepdims=True))
        alpha = jnp.exp(m_prev - m_new)
        p = jnp.exp(s - m_new)                                  # (J, tN)

        # Coordinate-expectation numerator + softmax denominator via explicit
        # per-row multiply + lane reductions (VPU + XLU).  This avoids any
        # Mosaic transpose / 3->128 lane padding of the (3, tN) grid tile that
        # an einsum-on-MXU lowering could introduce at large tN.
        g = g_ref[...]                                          # (3, tN)
        l_sc[...] = alpha * l_sc[...] + jnp.sum(p, axis=-1, keepdims=True)
        ax_sc[...] = alpha * ax_sc[...] + jnp.sum(p * g[0:1, :], axis=-1,
                                                  keepdims=True)
        ay_sc[...] = alpha * ay_sc[...] + jnp.sum(p * g[1:2, :], axis=-1,
                                                  keepdims=True)
        az_sc[...] = alpha * az_sc[...] + jnp.sum(p * g[2:3, :], axis=-1,
                                                  keepdims=True)
        m_sc[...] = m_new

        @pl.when(k == nk - 1)
        def _finalize():
            # Exact reciprocal: runs once per proposal on (J, 1), off the hot
            # loop; the ~2^-12 approx-vrcp error would be visible on the
            # 1e2-scale coordinates for no perf benefit.
            inv = pl.reciprocal(l_sc[...], approx=False)
            # grids = grid_centers[:, :3] + base_grid and the softmax weights
            # sum to one, so adding the center after normalization is exact.
            rx = ax_sc[...] * inv + c_ref[b, 0]
            ry = ay_sc[...] * inv + c_ref[b, 1]
            rz = az_sc[...] * inv + c_ref[b, 2]
            # Lane-dense (J, 128) output slab (first 3 lanes real).
            lane = lax.broadcasted_iota(jnp.int32, o_ref.shape, 1)
            o_ref[...] = jnp.where(
                lane == 0, rx,
                jnp.where(lane == 1, ry,
                          jnp.where(lane == 2, rz, 0.0)))

    @pl.when((valid_ref[b] == 0) & (k == nk - 1))
    def _invalid_body():
        # pred[b] stays zero for invalid proposals (matches the PyTorch module).
        o_ref[...] = jnp.zeros_like(o_ref)


def _vmem_capacity_bytes():
    """Physical VMEM per TensorCore (v5e/v6e: 128 MiB, v7x: 64 MiB)."""
    try:
        info = pltpu.get_tpu_info()
        for attr in ("vmem_capacity_bytes", "vmem_size_bytes", "vmem_bytes"):
            v = getattr(info, attr, None)
            if v:
                return int(v)
    except Exception:
        pass
    return 64 << 20   # conservative default (v7x per-TC VMEM)


def _choose_tile_n(n, c, j, vmem_cap):
    """Largest N-tile (multiple of 128 dividing N, or N itself) whose per-step
    footprint — double-buffered cube + grid tiles plus the (J, tN) softmax
    intermediates — fits within half of (VMEM capacity - 16 MiB headroom).

    At production 64^3 cubes this yields tile_n = N on v5e/v6e (128 MiB) and
    N/4 on v7x (64 MiB/TC), keeping DMAs at ~85%+ of the HBM roofline instead
    of many 90 KB transfers + per-step overhead.
    """
    bytes_per_lane = (2 * (c + 8) + 3 * j) * 4
    budget = max((vmem_cap - (16 << 20)) // 2, 8 << 20)
    cap_lanes = max(budget // bytes_per_lane, _LANE)
    if n <= cap_lanes:
        return n
    t = (cap_lanes // _LANE) * _LANE
    while t >= _LANE:
        if n % t == 0:
            return t
        t -= _LANE
    return n


def pose_regression_forward(cubes, base_grid, grid_centers, w, b=None, *,
                            beta=BETA, tile_n=None):
    """Fused PoseRegressionNet hot path.

    cubes: (B, C, N) f32 (ProjectLayer output, DHW flattened),
    base_grid: (N, 3) f32 batch-invariant voxel offsets (per-batch grids of the
    PyTorch module are grid_centers[:, :3] + base_grid),
    grid_centers: (B, >=4) f32, w: (J, C) f32 channel-mix weights.
    `b` (per-joint bias) is accepted for interface parity but ignored: a
    per-row constant is shift-invariant under the softmax over voxels.
    Returns pred: (B, J, 3) f32 with invalid proposals zeroed.
    """
    del b
    B, C, N = cubes.shape
    J = w.shape[0]

    vmem_cap = _vmem_capacity_bytes()
    if tile_n is None:
        tile_n = _choose_tile_n(N, C, J, vmem_cap)
    assert N % tile_n == 0, (N, tile_n)
    nk = N // tile_n

    # Layout / algebra plumbing (ideally emitted by the producer directly):
    #  - base grid lane-dense as (3, N): one tiny batch-invariant transpose
    #    instead of a per-batch (B, N, 3) HBM stream + per-call transpose pass.
    #  - BETA folded into the tiny (J, C) weight once.
    base_grid_t = jnp.transpose(base_grid.astype(jnp.float32), (1, 0))  # (3, N)
    w_beta = (beta * w).astype(jnp.float32)
    valid = (grid_centers[:, 3] >= 0).astype(jnp.int32)
    centers3 = grid_centers[:, :3].astype(jnp.float32)

    # Scoped VMEM: always set explicitly (v5e's default is only 16 MiB) and cap
    # at capacity - 16 MiB so v7x (64 MiB/TC) keeps compiler-scratch headroom.
    footprint = (2 * (C + 8) + 3 * J) * 4 * tile_n
    vmem_limit = int(min(vmem_cap - (16 << 20), max(32 << 20, 2 * footprint)))

    # TODO(synk): on v7x megacore, compact valid proposals (gather + batch
    # remap via scalar prefetch) when the valid count is typically small/odd;
    # with the batch axis "parallel" an idle core otherwise halves throughput.
    out = pl.pallas_call(
        _pose_reg_kernel,
        out_shape=jax.ShapeDtypeStruct((B, J, _LANE), jnp.float32),
        grid_spec=pltpu.PrefetchScalarGridSpec(
            num_scalar_prefetch=1,
            grid=(B, nk),
            in_specs=[
                # Invalid proposals keep re-referencing block (0, 0, 0), so
                # Pallas elides their cube DMAs entirely (pure HBM-traffic win
                # in a mem-bound kernel).
                pl.BlockSpec((None, C, tile_n),
                             lambda bi, ki, v: (bi * v[bi], 0, ki * v[bi])),
                pl.BlockSpec((J, C), lambda bi, ki, v: (0, 0)),
                # Batch-invariant grid: block index ignores bi; with
                # tile_n == N it is DMA'd exactly once for the whole call.
                pl.BlockSpec((3, tile_n),
                             lambda bi, ki, v: (0, ki * v[bi])),
                # Per-proposal centers: tiny, scalar-read at finalize.
                pl.BlockSpec(memory_space=pltpu.MemorySpace.SMEM),
            ],
            out_specs=pl.BlockSpec((None, J, _LANE),
                                   lambda bi, ki, v: (bi, 0, 0)),
            scratch_shapes=[
                pltpu.VMEM((J, 1), jnp.float32),   # running max
                pltpu.VMEM((J, 1), jnp.float32),   # running sum (denominator)
                pltpu.VMEM((J, 1), jnp.float32),   # running numerator x
                pltpu.VMEM((J, 1), jnp.float32),   # running numerator y
                pltpu.VMEM((J, 1), jnp.float32),   # running numerator z
            ],
        ),
        compiler_params=pltpu.CompilerParams(
            dimension_semantics=("parallel", "arbitrary"),
            vmem_limit_bytes=vmem_limit,
        ),
    )(valid, cubes, w_beta, base_grid_t, centers3)

    # Lane-dense output slab -> (B, J, 3); this slice is free layout plumbing.
    return out[..., :3]


def _reference(cubes, base_grid, grid_centers, w, b, beta=BETA):
    """Pure-JAX reproduction of the PyTorch semantics (bias + full softmax)."""
    hp = lax.Precision.HIGHEST
    grids = grid_centers[:, None, :3] + base_grid[None, :, :]          # (B,N,3)
    h = jnp.einsum("jc,bcn->bjn", w, cubes, precision=hp) + b[None, :, :]
    p = jax.nn.softmax(beta * h, axis=2)
    out = jnp.einsum("bjn,bnd->bjd", p, grids, precision=hp)           # (B,J,3)
    index = grid_centers[:, 3] >= 0
    return jnp.where(index[:, None, None], out, 0.0)


if __name__ == "__main__":
    key = jax.random.PRNGKey(0)
    k1, k2, k3 = jax.random.split(key, 3)

    B = 2                 # batch (proposals)
    J = 8                 # num_joints (cfg.NETWORK.NUM_JOINTS)
    C = J                 # FEATURE=False -> V2VNet(num_joints, num_joints)
    cube = (8, 8, 8)      # cfg.PICT_STRUCT.CUBE_SIZE (small)
    N = cube[0] * cube[1] * cube[2]
    grid_size = (200.0, 200.0, 200.0)  # cfg.PICT_STRUCT.GRID_SIZE

    # synthetic "cubes" (ProjectLayer output stand-in)
    cubes = jax.random.uniform(k1, (B, C, N), dtype=jnp.float32)

    # V2VNet-stand-in parameters.  The bias is deliberately non-zero: the
    # kernel drops it (softmax shift invariance) while the reference keeps it,
    # and the results must still agree.
    w = 0.1 * jax.random.normal(k2, (J, C), dtype=jnp.float32)
    b = 0.05 * jax.random.normal(k3, (J, 1), dtype=jnp.float32)

    # grid centers: batch 0 valid (col 3 >= 0), batch 1 invalid
    grid_centers = jnp.array(
        [[0.0, 0.0, 800.0, 1.0, 0.0],
         [50.0, -30.0, 900.0, -1.0, 0.0]], dtype=jnp.float32)

    # batch-invariant voxel offsets (N, 3); per-batch grids = center + base
    ax = [jnp.linspace(-gs / 2.0, gs / 2.0, cs) for gs, cs in zip(grid_size, cube)]
    gx, gy, gz = jnp.meshgrid(*ax, indexing="ij")
    base_grid = jnp.stack([gx.ravel(), gy.ravel(), gz.ravel()], axis=-1)  # (N,3)

    # tile_n=256 (< N=512) deliberately exercises the multi-tile online-softmax
    # accumulation path that production cube sizes (e.g. 64^3) require.
    fwd = jax.jit(functools.partial(pose_regression_forward, tile_n=256))
    pred = jax.block_until_ready(fwd(cubes, base_grid, grid_centers, w, b))

    ref = _reference(cubes, base_grid, grid_centers, w, b)
    assert pred.shape == (B, J, 3)
    assert jnp.allclose(pred, ref, atol=1e-2, rtol=1e-3), (pred, ref)

    print("KERNEL_OK")
</pallas_src>

<mosaic_0001>
module attributes {stable_mosaic.version = 11 : i64} {
  func.func @_pose_reg_kernel(%arg0: i32, %arg1: i32, %arg2: memref<2xi32, #tpu.memory_space<smem>>, %arg3: memref<1x8x256xf32, #tpu.memory_space<vmem>>, %arg4: memref<8x8xf32, #tpu.memory_space<vmem>>, %arg5: memref<3x256xf32, #tpu.memory_space<vmem>>, %arg6: memref<2x3xf32, #tpu.memory_space<smem>>, %arg7: memref<1x8x128xf32, #tpu.memory_space<vmem>>, %arg8: memref<8x1xf32, #tpu.memory_space<vmem>>, %arg9: memref<8x1xf32, #tpu.memory_space<vmem>>, %arg10: memref<8x1xf32, #tpu.memory_space<vmem>>, %arg11: memref<8x1xf32, #tpu.memory_space<vmem>>, %arg12: memref<8x1xf32, #tpu.memory_space<vmem>>) attributes {dimension_semantics = [#tpu.dimension_semantics<parallel>, #tpu.dimension_semantics<arbitrary>], iteration_bounds = array<i64: 2, 2>, scalar_prefetch = 1 : i64, scratch_operands = 5 : i64, tpu.core_type = #tpu.core_type<tc>, window_params = [{transform_indices = @transform_0, window_bounds = array<i64: 1, 8, 256>}, {pipeline_mode = #tpu.pipeline_mode<synchronous>, transform_indices = @transform_1, window_bounds = array<i64: 8, 8>}, {transform_indices = @transform_2, window_bounds = array<i64: 3, 256>}, {transform_indices = @transform_3, window_bounds = array<i64: 2, 3>}, {transform_indices = @transform_4, window_bounds = array<i64: 1, 8, 128>}]} {
    %0 = arith.index_cast %arg0 : i32 to index
    %1 = memref.load %arg2[%0] : memref<2xi32, #tpu.memory_space<smem>>
    %c0_i32 = arith.constant 0 : i32
    %2 = arith.cmpi sgt, %1, %c0_i32 : i32
    %3 = arith.extui %2 : i1 to i32
    %c0_i32_0 = arith.constant 0 : i32
    %4 = arith.cmpi ne, %3, %c0_i32_0 : i32
    scf.if %4 {
      %c0_i32_3 = arith.constant 0 : i32
      %12 = arith.cmpi eq, %arg1, %c0_i32_3 : i32
      %13 = arith.extui %12 : i1 to i32
      %c0_i32_4 = arith.constant 0 : i32
      %14 = arith.cmpi ne, %13, %c0_i32_4 : i32
      scf.if %14 {
        %cst_38 = arith.constant 0xFF800000 : f32
        %66 = vector.broadcast %cst_38 : f32 to vector<8x1xf32>
        %c0_39 = arith.constant 0 : index
        %c0_40 = arith.constant 0 : index
        %67 = vector.load %arg8[%c0_39, %c0_40] : memref<8x1xf32, #tpu.memory_space<vmem>>, vector<8x1xf32>
        tpu.vector_store %arg8[%c0_39, %c0_40], %66 {strides = array<i32>} : memref<8x1xf32, #tpu.memory_space<vmem>>, vector<8x1xf32>,
        %cst_41 = arith.constant 0.000000e+00 : f32
        %68 = vector.broadcast %cst_41 : f32 to vector<8x1xf32>
        %c0_42 = arith.constant 0 : index
        %c0_43 = arith.constant 0 : index
        %69 = vector.load %arg9[%c0_42, %c0_43] : memref<8x1xf32, #tpu.memory_space<vmem>>, vector<8x1xf32>
        tpu.vector_store %arg9[%c0_42, %c0_43], %68 {strides = array<i32>} : memref<8x1xf32, #tpu.memory_space<vmem>>, vector<8x1xf32>,
        %cst_44 = arith.constant 0.000000e+00 : f32
        %70 = vector.broadcast %cst_44 : f32 to vector<8x1xf32>
        %c0_45 = arith.constant 0 : index
        %c0_46 = arith.constant 0 : index
        %71 = vector.load %arg10[%c0_45, %c0_46] : memref<8x1xf32, #tpu.memory_space<vmem>>, vector<8x1xf32>
        tpu.vector_store %arg10[%c0_45, %c0_46], %70 {strides = array<i32>} : memref<8x1xf32, #tpu.memory_space<vmem>>, vector<8x1xf32>,
        %cst_47 = arith.constant 0.000000e+00 : f32
        %72 = vector.broadcast %cst_47 : f32 to vector<8x1xf32>
        %c0_48 = arith.constant 0 : index
        %c0_49 = arith.constant 0 : index
        %73 = vector.load %arg11[%c0_48, %c0_49] : memref<8x1xf32, #tpu.memory_space<vmem>>, vector<8x1xf32>
        tpu.vector_store %arg11[%c0_48, %c0_49], %72 {strides = array<i32>} : memref<8x1xf32, #tpu.memory_space<vmem>>, vector<8x1xf32>,
        %cst_50 = arith.constant 0.000000e+00 : f32
        %74 = vector.broadcast %cst_50 : f32 to vector<8x1xf32>
        %c0_51 = arith.constant 0 : index
        %c0_52 = arith.constant 0 : index
        %75 = vector.load %arg12[%c0_51, %c0_52] : memref<8x1xf32, #tpu.memory_space<vmem>>, vector<8x1xf32>
        tpu.vector_store %arg12[%c0_51, %c0_52], %74 {strides = array<i32>} : memref<8x1xf32, #tpu.memory_space<vmem>>, vector<8x1xf32>,
      } else {
      }
      %c0 = arith.constant 0 : index
      %c0_5 = arith.constant 0 : index
      %15 = vector.load %arg4[%c0, %c0_5] : memref<8x8xf32, #tpu.memory_space<vmem>>, vector<8x8xf32>
      %c0_6 = arith.constant 0 : index
      %c0_7 = arith.constant 0 : index
      %c0_8 = arith.constant 0 : index
      %16 = vector.load %arg3[%c0_6, %c0_7, %c0_8] : memref<1x8x256xf32, #tpu.memory_space<vmem>>, vector<1x8x256xf32>
      %17 = vector.shape_cast %16 : vector<1x8x256xf32> to vector<8x256xf32>
      %cst = arith.constant dense<0.000000e+00> : vector<8x256xf32>
      %18 = tpu.matmul %15, %17, %cst {dimension_numbers = #tpu.dot_dimension_numbers<[1], [0], [0], [1], [0, 0, 1, 1], [], []>, precision = #tpu.contract_precision<fp32>} : vector<8x8xf32>, vector<8x256xf32>, vector<8x256xf32> -> vector<8x256xf32>
      %c0_9 = arith.constant 0 : index
      %c0_10 = arith.constant 0 : index
      %19 = vector.load %arg8[%c0_9, %c0_10] : memref<8x1xf32, #tpu.memory_space<vmem>>, vector<8x1xf32>
      %cst_11 = arith.constant dense<0xFF800000> : vector<8xf32>
      %20 = vector.multi_reduction <maximumf>, %18, %cst_11 [1] : vector<8x256xf32> to vector<8xf32>
      %21 = vector.shape_cast %20 : vector<8xf32> to vector<8x1xf32>
      %22 = arith.maximumf %19, %21 : vector<8x1xf32>
      %23 = arith.subf %19, %22 : vector<8x1xf32>
      %24 = math.exp %23 : vector<8x1xf32>
      %25 = vector.broadcast %22 : vector<8x1xf32> to vector<8x256xf32>
      %26 = arith.subf %18, %25 : vector<8x256xf32>
      %27 = math.exp %26 : vector<8x256xf32>
      %c0_12 = arith.constant 0 : index
      %c0_13 = arith.constant 0 : index
      %28 = vector.load %arg5[%c0_12, %c0_13] : memref<3x256xf32, #tpu.memory_space<vmem>>, vector<3x256xf32>
      %c0_14 = arith.constant 0 : index
      %c0_15 = arith.constant 0 : index
      %29 = vector.load %arg9[%c0_14, %c0_15] : memref<8x1xf32, #tpu.memory_space<vmem>>, vector<8x1xf32>
      %30 = arith.mulf %24, %29 : vector<8x1xf32>
      %cst_16 = arith.constant dense<0.000000e+00> : vector<8xf32>
      %31 = vector.multi_reduction <add>, %27, %cst_16 [1] : vector<8x256xf32> to vector<8xf32>
      %32 = vector.shape_cast %31 : vector<8xf32> to vector<8x1xf32>
      %33 = arith.addf %30, %32 : vector<8x1xf32>
      %c0_17 = arith.constant 0 : index
      %c0_18 = arith.constant 0 : index
      %34 = vector.load %arg9[%c0_17, %c0_18] : memref<8x1xf32, #tpu.memory_space<vmem>>, vector<8x1xf32>
      tpu.vector_store %arg9[%c0_17, %c0_18], %33 {strides = array<i32>} : memref<8x1xf32, #tpu.memory_space<vmem>>, vector<8x1xf32>,
      %c0_19 = arith.constant 0 : index
      %c0_20 = arith.constant 0 : index
      %35 = vector.load %arg10[%c0_19, %c0_20] : memref<8x1xf32, #tpu.memory_space<vmem>>, vector<8x1xf32>
      %36 = arith.mulf %24, %35 : vector<8x1xf32>
      %37 = vector.extract_strided_slice %28 {offsets = [0, 0], sizes = [1, 256], strides = [1, 1]} : vector<3x256xf32> to vector<1x256xf32>
      %38 = vector.broadcast %37 : vector<1x256xf32> to vector<8x256xf32>
      %39 = arith.mulf %27, %38 : vector<8x256xf32>
      %cst_21 = arith.constant dense<0.000000e+00> : vector<8xf32>
      %40 = vector.multi_reduction <add>, %39, %cst_21 [1] : vector<8x256xf32> to vector<8xf32>
      %41 = vector.shape_cast %40 : vector<8xf32> to vector<8x1xf32>
      %42 = arith.addf %36, %41 : vector<8x1xf32>
      %c0_22 = arith.constant 0 : index
      %c0_23 = arith.constant 0 : index
      %43 = vector.load %arg10[%c0_22, %c0_23] : memref<8x1xf32, #tpu.memory_space<vmem>>, vector<8x1xf32>
      tpu.vector_store %arg10[%c0_22, %c0_23], %42 {strides = array<i32>} : memref<8x1xf32, #tpu.memory_space<vmem>>, vector<8x1xf32>,
      %c0_24 = arith.constant 0 : index
      %c0_25 = arith.constant 0 : index
      %44 = vector.load %arg11[%c0_24, %c0_25] : memref<8x1xf32, #tpu.memory_space<vmem>>, vector<8x1xf32>
      %45 = arith.mulf %24, %44 : vector<8x1xf32>
      %46 = vector.extract_strided_slice %28 {offsets = [1, 0], sizes = [1, 256], strides = [1, 1]} : vector<3x256xf32> to vector<1x256xf32>
      %47 = vector.broadcast %46 : vector<1x256xf32> to vector<8x256xf32>
      %48 = arith.mulf %27, %47 : vector<8x256xf32>
      %cst_26 = arith.constant dense<0.000000e+00> : vector<8xf32>
      %49 = vector.multi_reduction <add>, %48, %cst_26 [1] : vector<8x256xf32> to vector<8xf32>
      %50 = vector.shape_cast %49 : vector<8xf32> to vector<8x1xf32>
      %51 = arith.addf %45, %50 : vector<8x1xf32>
      %c0_27 = arith.constant 0 : index
      %c0_28 = arith.constant 0 : index
      %52 = vector.load %arg11[%c0_27, %c0_28] : memref<8x1xf32, #tpu.memory_space<vmem>>, vector<8x1xf32>
      tpu.vector_store %arg11[%c0_27, %c0_28], %51 {strides = array<i32>} : memref<8x1xf32, #tpu.memory_space<vmem>>, vector<8x1xf32>,
      %c0_29 = arith.constant 0 : index
      %c0_30 = arith.constant 0 : index
      %53 = vector.load %arg12[%c0_29, %c0_30] : memref<8x1xf32, #tpu.memory_space<vmem>>, vector<8x1xf32>
      %54 = arith.mulf %24, %53 : vector<8x1xf32>
      %55 = vector.extract_strided_slice %28 {offsets = [2, 0], sizes = [1, 256], strides = [1, 1]} : vector<3x256xf32> to vector<1x256xf32>
      %56 = vector.broadcast %55 : vector<1x256xf32> to vector<8x256xf32>
      %57 = arith.mulf %27, %56 : vector<8x256xf32>
      %cst_31 = arith.constant dense<0.000000e+00> : vector<8xf32>
      %58 = vector.multi_reduction <add>, %57, %cst_31 [1] : vector<8x256xf32> to vector<8xf32>
      %59 = vector.shape_cast %58 : vector<8xf32> to vector<8x1xf32>
      %60 = arith.addf %54, %59 : vector<8x1xf32>
      %c0_32 = arith.constant 0 : index
      %c0_33 = arith.constant 0 : index
      %61 = vector.load %arg12[%c0_32, %c0_33] : memref<8x1xf32, #tpu.memory_space<vmem>>, vector<8x1xf32>
      tpu.vector_store %arg12[%c0_32, %c0_33], %60 {strides = array<i32>} : memref<8x1xf32, #tpu.memory_space<vmem>>, vector<8x1xf32>,
      %c0_34 = arith.constant 0 : index
      %c0_35 = arith.constant 0 : index
      %62 = vector.load %arg8[%c0_34, %c0_35] : memref<8x1xf32, #tpu.memory_space<vmem>>, vector<8x1xf32>
      tpu.vector_store %arg8[%c0_34, %c0_35], %22 {strides = array<i32>} : memref<8x1xf32, #tpu.memory_space<vmem>>, vector<8x1xf32>,
      %c1_i32_36 = arith.constant 1 : i32
      %63 = arith.cmpi eq, %arg1, %c1_i32_36 : i32
      %64 = arith.extui %63 : i1 to i32
      %c0_i32_37 = arith.constant 0 : i32
      %65 = arith.cmpi ne, %64, %c0_i32_37 : i32
      scf.if %65 {
        %c0_38 = arith.constant 0 : index
        %c0_39 = arith.constant 0 : index
        %66 = vector.load %arg9[%c0_38, %c0_39] : memref<8x1xf32, #tpu.memory_space<vmem>>, vector<8x1xf32>
        %67 = tpu.reciprocal %66 : vector<8x1xf32> -> vector<8x1xf32>
        %c0_40 = arith.constant 0 : index
        %c0_41 = arith.constant 0 : index
        %68 = vector.load %arg10[%c0_40, %c0_41] : memref<8x1xf32, #tpu.memory_space<vmem>>, vector<8x1xf32>
        %69 = arith.mulf %68, %67 : vector<8x1xf32>
        %70 = arith.index_cast %arg0 : i32 to index
        %c0_42 = arith.constant 0 : index
        %71 = memref.load %arg6[%70, %c0_42] : memref<2x3xf32, #tpu.memory_space<smem>>
        %72 = vector.broadcast %71 : f32 to vector<8x1xf32>
        %73 = arith.addf %69, %72 : vector<8x1xf32>
        %c0_43 = arith.constant 0 : index
        %c0_44 = arith.constant 0 : index
        %74 = vector.load %arg11[%c0_43, %c0_44] : memref<8x1xf32, #tpu.memory_space<vmem>>, vector<8x1xf32>
        %75 = arith.mulf %74, %67 : vector<8x1xf32>
        %76 = arith.index_cast %arg0 : i32 to index
        %c1 = arith.constant 1 : index
        %77 = memref.load %arg6[%76, %c1] : memref<2x3xf32, #tpu.memory_space<smem>>
        %78 = vector.broadcast %77 : f32 to vector<8x1xf32>
        %79 = arith.addf %75, %78 : vector<8x1xf32>
        %c0_45 = arith.constant 0 : index
        %c0_46 = arith.constant 0 : index
        %80 = vector.load %arg12[%c0_45, %c0_46] : memref<8x1xf32, #tpu.memory_space<vmem>>, vector<8x1xf32>
        %81 = arith.mulf %80, %67 : vector<8x1xf32>
        %82 = arith.index_cast %arg0 : i32 to index
        %c2 = arith.constant 2 : index
        %83 = memref.load %arg6[%82, %c2] : memref<2x3xf32, #tpu.memory_space<smem>>
        %84 = vector.broadcast %83 : f32 to vector<8x1xf32>
        %85 = arith.addf %81, %84 : vector<8x1xf32>
        %86 = tpu.iota {dimensions = array<i32: 1>} : vector<8x128xi32>
        %c0_i32_47 = arith.constant 0 : i32
        %87 = vector.broadcast %c0_i32_47 : i32 to vector<8x128xi32>
        %88 = arith.cmpi eq, %86, %87 : vector<8x128xi32>
        %c1_i32_48 = arith.constant 1 : i32
        %89 = vector.broadcast %c1_i32_48 : i32 to vector<8x128xi32>
        %90 = arith.cmpi eq, %86, %89 : vector<8x128xi32>
        %c2_i32 = arith.constant 2 : i32
        %91 = vector.broadcast %c2_i32 : i32 to vector<8x128xi32>
        %92 = arith.cmpi eq, %86, %91 : vector<8x128xi32>
        %cst_49 = arith.constant 0.000000e+00 : f32
        %93 = vector.shape_cast %85 : vector<8x1xf32> to vector<8x1xf32>
        %94 = vector.broadcast %93 : vector<8x1xf32> to vector<8x128xf32>
        %95 = vector.broadcast %cst_49 : f32 to vector<8x128xf32>
        %96 = arith.select %92, %94, %95 : vector<8x128xi1>, vector<8x128xf32>
        %97 = vector.shape_cast %79 : vector<8x1xf32> to vector<8x1xf32>
        %98 = vector.broadcast %97 : vector<8x1xf32> to vector<8x128xf32>
        %99 = arith.select %90, %98, %96 : vector<8x128xi1>, vector<8x128xf32>
        %100 = vector.shape_cast %73 : vector<8x1xf32> to vector<8x1xf32>
        %101 = vector.broadcast %100 : vector<8x1xf32> to vector<8x128xf32>
        %102 = arith.select %88, %101, %99 : vector<8x128xi1>, vector<8x128xf32>
        %c0_50 = arith.constant 0 : index
        %c0_51 = arith.constant 0 : index
        %c0_52 = arith.constant 0 : index
        %103 = vector.load %arg7[%c0_50, %c0_51, %c0_52] : memref<1x8x128xf32, #tpu.memory_space<vmem>>, vector<1x8x128xf32>
        %104 = vector.shape_cast %103 : vector<1x8x128xf32> to vector<8x128xf32>
        %105 = vector.shape_cast %102 : vector<8x128xf32> to vector<1x8x128xf32>
        tpu.vector_store %arg7[%c0_50, %c0_51, %c0_52], %105 {strides = array<i32>} : memref<1x8x128xf32, #tpu.memory_space<vmem>>, vector<1x8x128xf32>,
      } else {
      }
    } else {
    }
    %5 = arith.index_cast %arg0 : i32 to index
    %6 = memref.load %arg2[%5] : memref<2xi32, #tpu.memory_space<smem>>
    %c0_i32_1 = arith.constant 0 : i32
    %7 = arith.cmpi eq, %6, %c0_i32_1 : i32
    %c1_i32 = arith.constant 1 : i32
    %8 = arith.cmpi eq, %arg1, %c1_i32 : i32
    %9 = arith.andi %7, %8 : i1
    %10 = arith.extui %9 : i1 to i32
    %c0_i32_2 = arith.constant 0 : i32
    %11 = arith.cmpi ne, %10, %c0_i32_2 : i32
    scf.if %11 {
      %cst = arith.constant 0.000000e+00 : f32
      %12 = vector.broadcast %cst : f32 to vector<8x128xf32>
      %c0 = arith.constant 0 : index
      %c0_3 = arith.constant 0 : index
      %c0_4 = arith.constant 0 : index
      %13 = vector.load %arg7[%c0, %c0_3, %c0_4] : memref<1x8x128xf32, #tpu.memory_space<vmem>>, vector<1x8x128xf32>
      %14 = vector.shape_cast %13 : vector<1x8x128xf32> to vector<8x128xf32>
      %15 = vector.shape_cast %12 : vector<8x128xf32> to vector<1x8x128xf32>
      tpu.vector_store %arg7[%c0, %c0_3, %c0_4], %15 {strides = array<i32>} : memref<1x8x128xf32, #tpu.memory_space<vmem>>, vector<1x8x128xf32>,
    } else {
    }
    return
  }
  func.func @transform_0(%arg0: i32, %arg1: i32, %arg2: memref<2xi32, #tpu.memory_space<smem>>) -> (i32, i32, i32) {
    %0 = arith.index_cast %arg0 : i32 to index
    %1 = memref.load %arg2[%0] : memref<2xi32, #tpu.memory_space<smem>>
    %2 = arith.muli %arg0, %1 : i32
    %3 = arith.index_cast %arg0 : i32 to index
    %4 = memref.load %arg2[%3] : memref<2xi32, #tpu.memory_space<smem>>
    %5 = arith.muli %arg1, %4 : i32
    %c0_i32 = arith.constant 0 : i32
    %c0_i32_0 = arith.constant 0 : i32
    return %2, %c0_i32, %5 : i32, i32, i32
  }
  func.func @transform_1(%arg0: i32, %arg1: i32, %arg2: memref<2xi32, #tpu.memory_space<smem>>) -> (i32, i32) {
    %c0_i32 = arith.constant 0 : i32
    %c0_i32_0 = arith.constant 0 : i32
    %c0_i32_1 = arith.constant 0 : i32
    return %c0_i32, %c0_i32_0 : i32, i32
  }
  func.func @transform_2(%arg0: i32, %arg1: i32, %arg2: memref<2xi32, #tpu.memory_space<smem>>) -> (i32, i32) {
    %0 = arith.index_cast %arg0 : i32 to index
    %1 = memref.load %arg2[%0] : memref<2xi32, #tpu.memory_space<smem>>
    %2 = arith.muli %arg1, %1 : i32
    %c0_i32 = arith.constant 0 : i32
    %c0_i32_0 = arith.constant 0 : i32
    return %c0_i32, %2 : i32, i32
  }
  func.func @transform_3(%arg0: i32, %arg1: i32, %arg2: memref<2xi32, #tpu.memory_space<smem>>) -> (i32, i32) {
    %c0_i32 = arith.constant 0 : i32
    %c0_i32_0 = arith.constant 0 : i32
    %c0_i32_1 = arith.constant 0 : i32
    return %c0_i32, %c0_i32_0 : i32, i32
  }
  func.func @transform_4(%arg0: i32, %arg1: i32, %arg2: memref<2xi32, #tpu.memory_space<smem>>) -> (i32, i32, i32) {
    %c0_i32 = arith.constant 0 : i32
    %c0_i32_0 = arith.constant 0 : i32
    %c0_i32_1 = arith.constant 0 : i32
    return %arg0, %c0_i32, %c0_i32_0 : i32, i32, i32
  }
}

</mosaic_0001>

<llo_original>
// kernel: pose_regression_forward.1
$region0: #{pose_regression_forward.1}
  #allocation0 [shape = 'u32[]', space=smem, size = 0x4, offset = 0x4, fixed_abs, tag = 'smem constant byte address 0x4 - core index']
  #allocation1 [shape = 'u32[144,128]{1,0:T(1,128)}', space=vmem, size = 0x12000, scoped, tag = 'internal scratch']
  #allocation2 [shape = 'f32[8,1]{1,0:T(8,128)}', space=vmem, size = 0x1000, scoped, tag = 'scratch operand']
  #allocation3 [shape = 'f32[8,1]{1,0:T(8,128)}', space=vmem, size = 0x1000, scoped, tag = 'scratch operand']
  #allocation4 [shape = 'f32[8,1]{1,0:T(8,128)}', space=vmem, size = 0x1000, scoped, tag = 'scratch operand']
  #allocation5 [shape = 'f32[8,1]{1,0:T(8,128)}', space=vmem, size = 0x1000, scoped, tag = 'scratch operand']
  #allocation6 [shape = 'f32[8,1]{1,0:T(8,128)}', space=vmem, size = 0x1000, scoped, tag = 'scratch operand']
  #allocation7 [shape = 's32[1]{0}', space=sflag, size = 0x4, scoped, tag = 'scoped memory for pose_regression_forward.1']
  #allocation8 [shape = 'u8[512]{0}', space=smem, size = 0x200, scoped, tag = 'prefetched SMEM operand 0']
  %s0 = inlined_call_operand.vmem [shape: s32[2], index: 0, kind: input, shape index: {}]
  %s1 = inlined_call_operand.hbm [shape: f32[2,8,512], index: 1, kind: input, shape index: {}]
  %s2 = inlined_call_operand.vmem [shape: f32[8,8], index: 2, kind: input, shape index: {}]
  %s3 = inlined_call_operand.vmem [shape: f32[3,512], index: 3, kind: input, shape index: {}]
  %s4 = inlined_call_operand.vmem [shape: f32[2,3], index: 4, kind: input, shape index: {}]
  %s5 = inlined_call_operand.vmem [shape: f32[2,8,128], index: 5, kind: output, shape index: {}]
  %s6 = sld [smem:[#allocation0]]
  $region73: #{pose_regression_forward.1} parent=0
    _
  %s8 = ssub.s32 1, %s6
  %s9 = scalar_select 0, %s8, %s6
  %s10 = sshll.u32 %s0, 4
  %s11 = int_to_ptr.vmem [resolvable:$true] %s10
  %13 = dma.vmem_to_smem %s11, 16, [#allocation8], [#allocation7]
  %14 = dma.done [#allocation7], 16
  %15 = sfence
  $region1: #{pose_regression_forward.1} parent=0
    #allocation9 [shape = 'u8[16384]{0}', space=vmem, size = 0x4000, scoped, tag = 'input window, operand 1']
    #allocation10 [shape = 's32[2]{0}', space=sflag, size = 0x8, scoped, tag = 'scoped memory for pose_regression_forward.1']
    #allocation11 [shape = 's32[2]{0}', space=sflag, size = 0x8, scoped, tag = 'scoped memory for pose_regression_forward.1']
    #allocation12 [shape = 'u8[1024]{0}', space=smem, size = 0x400, scoped, tag = 'input window, operand 4, single buffered']
    %16 = vsyncpa [#allocation10], 0
    %s17 = scalar_lea.sflag [#allocation10], 1
    %18 = vsyncpa %s17, 0
    %19 = vsyncpa [#allocation11], 0
    loop: start=0, step=1, limit=6
    $region2: #{pose_regression_forward.1} parent=1 // loop_pre_header
      _
    $region3: #{pose_regression_forward.1} parent=1 // loop_header
      %s21 = sphi 0, %s25
      %p22 = scmp.ge.s32.totalorder %s21, 6
      %s28 = sphi 0, %s40
      %s29 = sphi 0, %s36
      %s30 = sphi 0, %s28
      %s31 = sphi 0, %s29
      %s32 = sphi 0, %s30
      %s33 = sphi 0, %s31
      %s51 = sphi 0, %s53
      %s54 = sphi 0, %s51
      %s55 = sphi 0, %s54
      %s71 = sphi 0, %s55
      %s75 = sphi 0, %s75
      %s77 = sphi 0, %s75
      %s78 = sphi 0, %s77
      %s92 = sphi 0, %s78
      %s102 = sphi 0, %s104
      %s105 = sphi 0, %s102
      %s106 = sphi 0, %s105
      %s122 = sphi 0, %s106
      %s126 = sphi 0, %s126
      %s128 = sphi 0, %s126
      %s129 = sphi 0, %s128
      %s143 = sphi 0, %s129
      %s149 = sphi 0, %s151
      %s152 = sphi 0, %s149
      %s153 = sphi 0, %s152
      %s169 = sphi 0, %s153
    $region4: #{pose_regression_forward.1} parent=1 // loop_header_branch
      %24 = sbr.rel (%p22) target = $region8
    $region5: #{pose_regression_forward.1} parent=1 // loop_body
      %s26 = ssub.s32 %s21, 1
      %s27 = ssub.s32 %s21, 2
      %s34 = sadd.s32 1, %s29
      %p35 = scmp.ge.s32.totalorder %s34, 2
      %s36 = scalar_select %p35, 0, %s34
      %s37 = sadd.s32 1, %s28
      %s38 = scalar_select %p35, %s37, %s28
      %p39 = scmp.ge.s32.totalorder %s38, 2
      %s40 = scalar_select %p39, 0, %s38
      %s41 = sld [smem:[#allocation8 + %s28]]
      %s42 = smul.u32 %s28, %s41
      %s43 = smul.u32 %s29, %s41
      %s44 = sld [smem:[#allocation8 + %s40]]
      %s45 = smul.u32 %s40, %s44
      %s46 = smul.u32 %s36, %s44
      %s47 = ssub.s32 %s42, %s45
      %s48 = ssub.s32 %s43, %s46
      %s49 = sor.u32 %s47, %s48
      %p50 = scmp.eq.s32.totalorder %s49, 0
      %s52 = sadd.s32 %s51, 1
      %s53 = scalar_select %p50, %s51, %s52
      %p56 = pneg %p50
      %p57 = scmp.eq.s32.totalorder %s21, 3
      %p58 = por %p56, %p57
      %p59 = scmp.ne.s32.totalorder %s51, %s54
      %p60 = scmp.eq.s32.totalorder %s21, 0
      %p61 = por %p59, %p60
      %p62 = scmp.ne.s32.totalorder %s51, %s54
      %p63 = scmp.eq.s32.totalorder %s26, 3
      %p64 = por %p62, %p63
      %p65 = scmp.ne.s32.totalorder %s54, %s55
      %p66 = scmp.eq.s32.totalorder %s26, 0
      %p67 = por %p65, %p66
      %p68 = scmp.ne.s32.totalorder %s54, %s55
      %p69 = scmp.eq.s32.totalorder %s27, 3
      %p70 = por %p68, %p69
      %p72 = scmp.ne.s32.totalorder %s55, %s71
      %p73 = scmp.eq.s32.totalorder %s27, 0
      %p74 = por %p72, %p73
      %s76 = sadd.s32 %s75, 1
      %p79 = scmp.eq.s32.totalorder %s21, 3
      %p80 = scmp.ne.s32.totalorder %s75, %s77
      %p81 = scmp.eq.s32.totalorder %s21, 0
      %p82 = por %p80, %p81
      %p83 = scmp.ne.s32.totalorder %s75, %s77
      %p84 = scmp.eq.s32.totalorder %s26, 3
      %p85 = por %p83, %p84
      %p86 = scmp.ne.s32.totalorder %s77, %s78
      %p87 = scmp.eq.s32.totalorder %s26, 0
      %p88 = por %p86, %p87
      %p89 = scmp.ne.s32.totalorder %s77, %s78
      %p90 = scmp.eq.s32.totalorder %s27, 3
      %p91 = por %p89, %p90
      %p93 = scmp.ne.s32.totalorder %s78, %s92
      %p94 = scmp.eq.s32.totalorder %s27, 0
      %p95 = por %p93, %p94
      %s96 = sld [smem:[#allocation8 + %s28]]
      %s97 = smul.u32 %s29, %s96
      %s98 = sld [smem:[#allocation8 + %s40]]
      %s99 = smul.u32 %s36, %s98
      %s100 = ssub.s32 %s97, %s99
      %p101 = scmp.eq.s32.totalorder %s100, 0
      %s103 = sadd.s32 %s102, 1
      %s104 = scalar_select %p101, %s102, %s103
      %p107 = pneg %p101
      %p108 = scmp.eq.s32.totalorder %s21, 3
      %p109 = por %p107, %p108
      %p110 = scmp.ne.s32.totalorder %s102, %s105
      %p111 = scmp.eq.s32.totalorder %s21, 0
      %p112 = por %p110, %p111
      %p113 = scmp.ne.s32.totalorder %s102, %s105
      %p114 = scmp.eq.s32.totalorder %s26, 3
      %p115 = por %p113, %p114
      %p116 = scmp.ne.s32.totalorder %s105, %s106
      %p117 = scmp.eq.s32.totalorder %s26, 0
      %p118 = por %p116, %p117
      %p119 = scmp.ne.s32.totalorder %s105, %s106
      %p120 = scmp.eq.s32.totalorder %s27, 3
      %p121 = por %p119, %p120
      %p123 = scmp.ne.s32.totalorder %s106, %s122
      %p124 = scmp.eq.s32.totalorder %s27, 0
      %p125 = por %p123, %p124
      %s127 = sadd.s32 %s126, 1
      %p130 = scmp.eq.s32.totalorder %s21, 3
      %p131 = scmp.ne.s32.totalorder %s126, %s128
      %p132 = scmp.eq.s32.totalorder %s21, 0
      %p133 = por %p131, %p132
      %p134 = scmp.ne.s32.totalorder %s126, %s128
      %p135 = scmp.eq.s32.totalorder %s26, 3
      %p136 = por %p134, %p135
      %p137 = scmp.ne.s32.totalorder %s128, %s129
      %p138 = scmp.eq.s32.totalorder %s26, 0
      %p139 = por %p137, %p138
      %p140 = scmp.ne.s32.totalorder %s128, %s129
      %p141 = scmp.eq.s32.totalorder %s27, 3
      %p142 = por %p140, %p141
      %p144 = scmp.ne.s32.totalorder %s129, %s143
      %p145 = scmp.eq.s32.totalorder %s27, 0
      %p146 = por %p144, %p145
      %s147 = ssub.s32 %s28, %s40
      %p148 = scmp.eq.s32.totalorder %s147, 0
      %s150 = sadd.s32 %s149, 1
      %s151 = scalar_select %p148, %s149, %s150
      %p154 = pneg %p148
      %p155 = scmp.eq.s32.totalorder %s21, 3
      %p156 = por %p154, %p155
      %p157 = scmp.ne.s32.totalorder %s149, %s152
      %p158 = scmp.eq.s32.totalorder %s21, 0
      %p159 = por %p157, %p158
      %p160 = scmp.ne.s32.totalorder %s149, %s152
      %p161 = scmp.eq.s32.totalorder %s26, 3
      %p162 = por %p160, %p161
      %p163 = scmp.ne.s32.totalorder %s152, %s153
      %p164 = scmp.eq.s32.totalorder %s26, 0
      %p165 = por %p163, %p164
      %p166 = scmp.ne.s32.totalorder %s152, %s153
      %p167 = scmp.eq.s32.totalorder %s27, 3
      %p168 = por %p166, %p167
      %p170 = scmp.ne.s32.totalorder %s153, %s169
      %p171 = scmp.eq.s32.totalorder %s27, 0
      %p172 = por %p170, %p171
      %p173 = scmp.le.s32.totalorder 1, %s21
      %p174 = scmp.lt.s32.totalorder %s21, 5
      %p175 = pnand %p173, %p174
      %p176 = pneg %p175
      // Predicated region
      $region9: #{pose_regression_forward.1} parent=5 // pred_check
        _
      $region10: #{pose_regression_forward.1} parent=5 // pred_check_branch
        %178 = sbr.rel (%p175) target = $region12
      $region11: #{pose_regression_forward.1} parent=5 // pred_region
        %s179 = ssub.s32 %s21, 1
        // Predicated region
        $region13: #{pose_regression_forward.1} parent=11 // pred_check
          %p180 = pneg %p88
        $region14: #{pose_regression_forward.1} parent=11 // pred_check_branch
          %182 = sbr.rel (%p180) target = $region16
        $region15: #{pose_regression_forward.1} parent=11 // pred_region
          _
        $region16: #{pose_regression_forward.1} parent=11 // pred_fallthru
          _
        // Predicated region
        $region17: #{pose_regression_forward.1} parent=11 // pred_check
          %p183 = pneg %p139
        $region18: #{pose_regression_forward.1} parent=11 // pred_check_branch
          %185 = sbr.rel (%p183) target = $region20
        $region19: #{pose_regression_forward.1} parent=11 // pred_region
          %s187 = ssub.s32 32, 32
          %188 = vsyncadd [#allocation11], %s187
          %s190 = sshll.u32 %s4, 4
          %s191 = int_to_ptr.vmem [resolvable:$true] %s190
          %193 = dma.vmem_to_smem %s191, 32, [#allocation12], [#allocation11]
        $region20: #{pose_regression_forward.1} parent=11 // pred_fallthru
          _
      $region12: #{pose_regression_forward.1} parent=5 // pred_fallthru
        _
      %p194 = scmp.lt.s32.totalorder %s21, 4
      // Predicated region
      $region21: #{pose_regression_forward.1} parent=5 // pred_check
        %p195 = pneg %p194
      $region22: #{pose_regression_forward.1} parent=5 // pred_check_branch
        %197 = sbr.rel (%p195) target = $region24
      $region23: #{pose_regression_forward.1} parent=5 // pred_region
        // Predicated region
        $region25: #{pose_regression_forward.1} parent=23 // pred_check
          %p198 = pneg %p61
        $region26: #{pose_regression_forward.1} parent=23 // pred_check_branch
          %200 = sbr.rel (%p198) target = $region28
        $region27: #{pose_regression_forward.1} parent=23 // pred_region
          %s201 = sand.u32 %s51, 1
          %s202 = scalar_lea.sflag [#allocation10], %s201
          %s203 = sand.u32 %s51, 1
          %s204 = smul.addr %s203, 16
          %s205 = scalar_lea.vmem [#allocation9], %s204
          %s206 = sld [smem:[#allocation8 + %s28]]
          %s207 = smul.u32 %s28, %s206
          %s208 = smul.u32 %s29, %s206
          %s209 = smul.u32 2, %s208
          %s211 = ssub.s32 256, 256
          %212 = vsyncadd %s202, %s211
          %s213 = smul.addr %s207, 4
          %s214 = sadd.s32 %s209, %s213
          %s215 = smul.addr %s214, 128
          %s216 = scalar_lea.hbm %s1, %s215
          %s218 = sshll.u32 %s205, 4
          %s219 = int_to_ptr.vmem [resolvable:$true] %s218
          %221 = dma.hbm_to_vmem [thread:$0]  %s216, 256, %s219, %s202
        $region28: #{pose_regression_forward.1} parent=23 // pred_fallthru
          _
        // Predicated region
        $region29: #{pose_regression_forward.1} parent=23 // pred_check
          %p222 = pneg %p112
        $region30: #{pose_regression_forward.1} parent=23 // pred_check_branch
          %224 = sbr.rel (%p222) target = $region32
        $region31: #{pose_regression_forward.1} parent=23 // pred_region
          %s225 = sld [smem:[#allocation8 + %s28]]
          %s226 = smul.u32 %s29, %s225
          %s227 = smul.u32 2, %s226
          %p228 = scmp.lt.s32.totalorder %s227, 3
          %s229 = scalar_select %p228, %s227, 3
          %s230 = smul.addr %s229, 4
          %s231 = scalar_lea.vmem %s3, %s230
          %s232 = sld [smem:[#allocation8 + %s28]]
          %s233 = smul.u32 %s29, %s232
          %s234 = smul.u32 2, %s233
        $region32: #{pose_regression_forward.1} parent=23 // pred_fallthru
          _
      $region24: #{pose_regression_forward.1} parent=5 // pred_fallthru
        _
      %p235 = scmp.le.s32.totalorder 1, %s21
      %p236 = scmp.lt.s32.totalorder %s21, 5
      %p237 = pnand %p235, %p236
      %p238 = pneg %p237
      // Predicated region
      $region33: #{pose_regression_forward.1} parent=5 // pred_check
        _
      $region34: #{pose_regression_forward.1} parent=5 // pred_check_branch
        %240 = sbr.rel (%p237) target = $region36
      $region35: #{pose_regression_forward.1} parent=5 // pred_region
        %s241 = ssub.s32 %s21, 1
        %s242 = sand.u32 %s54, 1
        %s243 = scalar_lea.sflag [#allocation10], %s242
        %s244 = sand.u32 %s54, 1
        %s245 = smul.addr %s244, 16
        %s246 = scalar_lea.vmem [#allocation9], %s245
        // Predicated region
        $region37: #{pose_regression_forward.1} parent=35 // pred_check
          %p247 = pneg %p67
        $region38: #{pose_regression_forward.1} parent=35 // pred_check_branch
          %249 = sbr.rel (%p247) target = $region40
        $region39: #{pose_regression_forward.1} parent=35 // pred_region
          %250 = dma.done %s243, 256
        $region40: #{pose_regression_forward.1} parent=35 // pred_fallthru
          _
        // Predicated region
        $region41: #{pose_regression_forward.1} parent=35 // pred_check
          %p251 = pneg %p139
        $region42: #{pose_regression_forward.1} parent=35 // pred_check_branch
          %253 = sbr.rel (%p251) target = $region44
        $region43: #{pose_regression_forward.1} parent=35 // pred_region
          %254 = dma.done [#allocation11], 32
        $region44: #{pose_regression_forward.1} parent=35 // pred_fallthru
          _
        %255 = sfence
        %s256 = sand.u32 %s54, 1
        %s257 = scalar_lea.sflag [#allocation10], %s256
        %s258 = sand.u32 %s54, 1
        %s259 = smul.addr %s258, 16
        %s260 = scalar_lea.vmem [#allocation9], %s259
        %p261 = pneg %p67
        %p262 = pneg %p64
        %p263 = pneg %p88
        %p264 = pneg %p85
        %s265 = sld [smem:[#allocation8 + %s30]]
        %s266 = smul.u32 %s31, %s265
        %s267 = smul.u32 2, %s266
        %p268 = scmp.lt.s32.totalorder %s267, 3
        %s269 = scalar_select %p268, %s267, 3
        %s270 = smul.addr %s269, 4
        %s271 = scalar_lea.vmem %s3, %s270
        %p272 = pneg %p118
        %p273 = pneg %p115
        %p274 = pneg %p139
        %p275 = pneg %p136
        %p276 = pneg %p165
        %p277 = pneg %p162
        %p278 = scmp.lt.s32.totalorder %s30, 1
        %s279 = scalar_select %p278, %s30, 1
        %s280 = smul.addr %s279, 8
        %s281 = scalar_lea.vmem %s5, %s280
        %s282 = sld [smem:[#allocation8 + %s30]]
        %s283 = smul.u32 %s30, %s282
        %s284 = smul.u32 %s31, %s282
        %s285 = smul.u32 2, %s284
        %s286 = sld [smem:[#allocation8 + %s30]]
        %s287 = smul.u32 %s31, %s286
        %s288 = smul.u32 2, %s287
        %p289 = scmp.lt.s32.totalorder %s288, 3
        %s290 = scalar_select %p289, %s288, 3
        %s291 = smul.addr %s290, 4
        %s292 = scalar_lea.vmem %s3, %s291
        %s293 = sld [smem:[#allocation8 + %s30]]
        %s294 = smul.u32 %s31, %s293
        %s295 = smul.u32 2, %s294
        %p296 = scmp.lt.s32.totalorder %s30, 1
        %s297 = scalar_select %p296, %s30, 1
        %s298 = smul.addr %s297, 8
        %s299 = scalar_lea.vmem %s5, %s298
        %s300 = sld [smem:[#allocation8 + %s30]]
        %p301 = scmp.gt.s32.totalorder %s300, 0
        // Predicated region
        $region45: #{pose_regression_forward.1} parent=35 // pred_check
          %p302 = pneg %p301
        $region46: #{pose_regression_forward.1} parent=35 // pred_check_branch
          %304 = sbr.rel (%p302) target = $region48
        $region47: #{pose_regression_forward.1} parent=35 // pred_region
          %p305 = scmp.eq.s32.totalorder %s31, 0
          // Predicated region
          $region49: #{pose_regression_forward.1} parent=47 // pred_check
            %p306 = pneg %p305
          $region50: #{pose_regression_forward.1} parent=47 // pred_check_branch
            %308 = sbr.rel (%p306) target = $region52
          $region51: #{pose_regression_forward.1} parent=47 // pred_region
            %vm309 = vcmask 7168
            %310 = vst.msk [vmem:[#allocation2] sm:$0xff] %vm309, -inf
            %311 = vst.msk [vmem:[#allocation3] sm:$0xff] %vm309, 0.0
            %312 = vst.msk [vmem:[#allocation4] sm:$0xff] %vm309, 0.0
            %313 = vst.msk [vmem:[#allocation5] sm:$0xff] %vm309, 0.0
            %314 = vst.msk [vmem:[#allocation6] sm:$0xff] %vm309, 0.0
          $region52: #{pose_regression_forward.1} parent=47 // pred_fallthru
            _
          %v315 = vld [vmem:[%s2] sm:$0xff]
          %v316 = vld [vmem:[%s246] sm:$0xff]
          %v317 = vld [vmem:[%s246 + $0x8] sm:$0xff]
          %vm318 = vcmask 64512
          %v320 = vsel %vm318, %v315, 0
          %322 = vmatprep.subr.mxu0 0.0
          %323 = vmatpush1.msra.mxu0 0.0
          %324 = vmatprep.subr.mxu0 0.0
          %325 = vmatpush1.msra.mxu0 0.0
          %326 = vmatprep.subr.mxu0 0.0
          %327 = vmatpush1.msra.mxu0 0.0
          %328 = vmatprep.subr.mxu0 0.0
          %329 = vmatpush1.msra.mxu0 0.0
          %330 = vmatprep.subr.mxu0 0.0
          %331 = vmatpush1.msra.mxu0 0.0
          %332 = vmatprep.subr.mxu0 0.0
          %333 = vmatpush1.msra.mxu0 0.0
          %334 = vmatprep.subr.mxu0 0.0
          %335 = vmatpush1.msra.mxu0 0.0
          %336 = vmatprep.subr.mxu0 0.0
          %337 = vmatpush1.msra.mxu0 0.0
          %338 = vmatprep.subr.mxu0 0.0
          %339 = vmatpush1.msra.mxu0 0.0
          %340 = vmatprep.subr.mxu0 0.0
          %341 = vmatpush1.msra.mxu0 0.0
          %342 = vmatprep.subr.mxu0 0.0
          %343 = vmatpush1.msra.mxu0 0.0
          %344 = vmatprep.subr.mxu0 0.0
          %345 = vmatpush1.msra.mxu0 0.0
          %346 = vmatprep.subr.mxu0 0.0
          %347 = vmatpush1.msra.mxu0 0.0
          %348 = vmatprep.subr.mxu0 0.0
          %349 = vmatpush1.msra.mxu0 0.0
          %350 = vmatprep.subr.mxu0 0.0
          %351 = vmatpush1.msra.mxu0 0.0
          %v352 = vand.u32 %v317, 4294901760
          %353 = vmatprep.subr.mxu0 %v352
          %v354 = vand.u32 %v316, 4294901760
          %355 = vmatpush1.msra.mxu0 %v354
          %356 = vmatprep.subr.mxu0 0.0
          %357 = vmatpush2.msra.mxu0 0.0
          %358 = vmatprep.subr.mxu0 0.0
          %359 = vmatpush2.msra.mxu0 0.0
          %360 = vmatprep.subr.mxu0 0.0
          %361 = vmatpush2.msra.mxu0 0.0
          %362 = vmatprep.subr.mxu0 0.0
          %363 = vmatpush2.msra.mxu0 0.0
          %364 = vmatprep.subr.mxu0 0.0
          %365 = vmatpush2.msra.mxu0 0.0
          %366 = vmatprep.subr.mxu0 0.0
          %367 = vmatpush2.msra.mxu0 0.0
          %368 = vmatprep.subr.mxu0 0.0
          %369 = vmatpush2.msra.mxu0 0.0
          %370 = vmatprep.subr.mxu0 0.0
          %371 = vmatpush2.msra.mxu0 0.0
          %372 = vmatprep.subr.mxu0 0.0
          %373 = vmatpush2.msra.mxu0 0.0
          %374 = vmatprep.subr.mxu0 0.0
          %375 = vmatpush2.msra.mxu0 0.0
          %376 = vmatprep.subr.mxu0 0.0
          %377 = vmatpush2.msra.mxu0 0.0
          %378 = vmatprep.subr.mxu0 0.0
          %379 = vmatpush2.msra.mxu0 0.0
          %380 = vmatprep.subr.mxu0 0.0
          %381 = vmatpush2.msra.mxu0 0.0
          %382 = vmatprep.subr.mxu0 0.0
          %383 = vmatpush2.msra.mxu0 0.0
          %384 = vmatprep.subr.mxu0 0.0
          %385 = vmatpush2.msra.mxu0 0.0
          %386 = vmatprep.subr.mxu0 0.0
          %387 = vmatpush2.msra.mxu0 0.0
          %388 = vmatprep.mubr.f32.mxu0 0.0
          %v389 = vand.u32 %v320, 4294901760
          %v390 = vsub.f32 %v320, %v389
          %v391 = vand.u32 %v390, 4294901760
          %v392 = vsub.f32 %v390, %v391
          %v393 = vand.u32 %v392, 4294901760
          %394 = vmatmul.mubr.f32.gmra.mxu0 %v393
          %v395 = vpop.f32.mrf.mxu0
          %v396 = vadd.f32 0.0, %v395
          %v397 = vpop.f32.mrf.mxu0
          %v398 = vadd.f32 0.0, %v397
          %399 = vdwg.mxu0
          %400 = vmatprep.subr.mxu0 0.0
          %401 = vmatpush1.msra.mxu0 0.0
          %402 = vmatprep.subr.mxu0 0.0
          %403 = vmatpush1.msra.mxu0 0.0
          %404 = vmatprep.subr.mxu0 0.0
          %405 = vmatpush1.msra.mxu0 0.0
          %406 = vmatprep.subr.mxu0 0.0
          %407 = vmatpush1.msra.mxu0 0.0
          %408 = vmatprep.subr.mxu0 0.0
          %409 = vmatpush1.msra.mxu0 0.0
          %410 = vmatprep.subr.mxu0 0.0
          %411 = vmatpush1.msra.mxu0 0.0
          %412 = vmatprep.subr.mxu0 0.0
          %413 = vmatpush1.msra.mxu0 0.0
          %414 = vmatprep.subr.mxu0 0.0
          %415 = vmatpush1.msra.mxu0 0.0
          %416 = vmatprep.subr.mxu0 0.0
          %417 = vmatpush1.msra.mxu0 0.0
          %418 = vmatprep.subr.mxu0 0.0
          %419 = vmatpush1.msra.mxu0 0.0
          %420 = vmatprep.subr.mxu0 0.0
          %421 = vmatpush1.msra.mxu0 0.0
          %422 = vmatprep.subr.mxu0 0.0
          %423 = vmatpush1.msra.mxu0 0.0
          %424 = vmatprep.subr.mxu0 0.0
          %425 = vmatpush1.msra.mxu0 0.0
          %426 = vmatprep.subr.mxu0 0.0
          %427 = vmatpush1.msra.mxu0 0.0
          %428 = vmatprep.subr.mxu0 0.0
          %429 = vmatpush1.msra.mxu0 0.0
          %v430 = vand.u32 %v317, 4294901760
          %v431 = vsub.f32 %v317, %v430
          %v432 = vand.u32 %v431, 4294901760
          %v433 = vsub.f32 %v431, %v432
          %v434 = vand.u32 %v433, 4294901760
          %435 = vmatprep.subr.mxu0 %v434
          %v436 = vand.u32 %v316, 4294901760
          %v437 = vsub.f32 %v316, %v436
          %v438 = vand.u32 %v437, 4294901760
          %v439 = vsub.f32 %v437, %v438
          %v440 = vand.u32 %v439, 4294901760
          %441 = vmatpush1.msra.mxu0 %v440
          %442 = vmatprep.subr.mxu0 0.0
          %443 = vmatpush2.msra.mxu0 0.0
          %444 = vmatprep.subr.mxu0 0.0
          %445 = vmatpush2.msra.mxu0 0.0
          %446 = vmatprep.subr.mxu0 0.0
          %447 = vmatpush2.msra.mxu0 0.0
          %448 = vmatprep.subr.mxu0 0.0
          %449 = vmatpush2.msra.mxu0 0.0
          %450 = vmatprep.subr.mxu0 0.0
          %451 = vmatpush2.msra.mxu0 0.0
          %452 = vmatprep.subr.mxu0 0.0
          %453 = vmatpush2.msra.mxu0 0.0
          %454 = vmatprep.subr.mxu0 0.0
          %455 = vmatpush2.msra.mxu0 0.0
          %456 = vmatprep.subr.mxu0 0.0
          %457 = vmatpush2.msra.mxu0 0.0
          %458 = vmatprep.subr.mxu0 0.0
          %459 = vmatpush2.msra.mxu0 0.0
          %460 = vmatprep.subr.mxu0 0.0
          %461 = vmatpush2.msra.mxu0 0.0
          %462 = vmatprep.subr.mxu0 0.0
          %463 = vmatpush2.msra.mxu0 0.0
          %464 = vmatprep.subr.mxu0 0.0
          %465 = vmatpush2.msra.mxu0 0.0
          %466 = vmatprep.subr.mxu0 0.0
          %467 = vmatpush2.msra.mxu0 0.0
          %468 = vmatprep.subr.mxu0 0.0
          %469 = vmatpush2.msra.mxu0 0.0
          %470 = vmatprep.subr.mxu0 0.0
          %471 = vmatpush2.msra.mxu0 0.0
          %472 = vmatprep.subr.mxu0 0.0
          %473 = vmatpush2.msra.mxu0 0.0
          %474 = vmatprep.mubr.f32.mxu0 0.0
          %v475 = vand.u32 %v320, 4294901760
          %476 = vmatmul.mubr.f32.gmra.mxu0 %v475
          %v477 = vpop.f32.mrf.mxu0
          %v478 = vadd.f32 %v396, %v477
          %v479 = vpop.f32.mrf.mxu0
          %v480 = vadd.f32 %v398, %v479
          %481 = vdwg.mxu0
          %482 = vmatprep.subr.mxu0 0.0
          %483 = vmatpush1.msra.mxu0 0.0
          %484 = vmatprep.subr.mxu0 0.0
          %485 = vmatpush1.msra.mxu0 0.0
          %486 = vmatprep.subr.mxu0 0.0
          %487 = vmatpush1.msra.mxu0 0.0
          %488 = vmatprep.subr.mxu0 0.0
          %489 = vmatpush1.msra.mxu0 0.0
          %490 = vmatprep.subr.mxu0 0.0
          %491 = vmatpush1.msra.mxu0 0.0
          %492 = vmatprep.subr.mxu0 0.0
          %493 = vmatpush1.msra.mxu0 0.0
          %494 = vmatprep.subr.mxu0 0.0
          %495 = vmatpush1.msra.mxu0 0.0
          %496 = vmatprep.subr.mxu0 0.0
          %497 = vmatpush1.msra.mxu0 0.0
          %498 = vmatprep.subr.mxu0 0.0
          %499 = vmatpush1.msra.mxu0 0.0
          %500 = vmatprep.subr.mxu0 0.0
          %501 = vmatpush1.msra.mxu0 0.0
          %502 = vmatprep.subr.mxu0 0.0
          %503 = vmatpush1.msra.mxu0 0.0
          %504 = vmatprep.subr.mxu0 0.0
          %505 = vmatpush1.msra.mxu0 0.0
          %506 = vmatprep.subr.mxu0 0.0
          %507 = vmatpush1.msra.mxu0 0.0
          %508 = vmatprep.subr.mxu0 0.0
          %509 = vmatpush1.msra.mxu0 0.0
          %510 = vmatprep.subr.mxu0 0.0
          %511 = vmatpush1.msra.mxu0 0.0
          %v512 = vand.u32 %v317, 4294901760
          %v513 = vsub.f32 %v317, %v512
          %514 = vmatprep.subr.mxu0 %v513
          %v515 = vand.u32 %v316, 4294901760
          %v516 = vsub.f32 %v316, %v515
          %517 = vmatpush1.msra.mxu0 %v516
          %518 = vmatprep.subr.mxu0 0.0
          %519 = vmatpush2.msra.mxu0 0.0
          %520 = vmatprep.subr.mxu0 0.0
          %521 = vmatpush2.msra.mxu0 0.0
          %522 = vmatprep.subr.mxu0 0.0
          %523 = vmatpush2.msra.mxu0 0.0
          %524 = vmatprep.subr.mxu0 0.0
          %525 = vmatpush2.msra.mxu0 0.0
          %526 = vmatprep.subr.mxu0 0.0
          %527 = vmatpush2.msra.mxu0 0.0
          %528 = vmatprep.subr.mxu0 0.0
          %529 = vmatpush2.msra.mxu0 0.0
          %530 = vmatprep.subr.mxu0 0.0
          %531 = vmatpush2.msra.mxu0 0.0
          %532 = vmatprep.subr.mxu0 0.0
          %533 = vmatpush2.msra.mxu0 0.0
          %534 = vmatprep.subr.mxu0 0.0
          %535 = vmatpush2.msra.mxu0 0.0
          %536 = vmatprep.subr.mxu0 0.0
          %537 = vmatpush2.msra.mxu0 0.0
          %538 = vmatprep.subr.mxu0 0.0
          %539 = vmatpush2.msra.mxu0 0.0
          %540 = vmatprep.subr.mxu0 0.0
          %541 = vmatpush2.msra.mxu0 0.0
          %542 = vmatprep.subr.mxu0 0.0
          %543 = vmatpush2.msra.mxu0 0.0
          %544 = vmatprep.subr.mxu0 0.0
          %545 = vmatpush2.msra.mxu0 0.0
          %546 = vmatprep.subr.mxu0 0.0
          %547 = vmatpush2.msra.mxu0 0.0
          %548 = vmatprep.subr.mxu0 0.0
          %549 = vmatpush2.msra.mxu0 0.0
          %550 = vmatprep.mubr.f32.mxu0 0.0
          %v551 = vand.u32 %v320, 4294901760
          %v552 = vsub.f32 %v320, %v551
          %553 = vmatmul.mubr.f32.gmra.mxu0 %v552
          %v554 = vpop.f32.mrf.mxu0
          %v555 = vadd.f32 %v478, %v554
          %v556 = vpop.f32.mrf.mxu0
          %v557 = vadd.f32 %v480, %v556
          %558 = vdwg.mxu0
          %559 = vmatprep.subr.mxu0 0.0
          %560 = vmatpush1.msra.mxu0 0.0
          %561 = vmatprep.subr.mxu0 0.0
          %562 = vmatpush1.msra.mxu0 0.0
          %563 = vmatprep.subr.mxu0 0.0
          %564 = vmatpush1.msra.mxu0 0.0
          %565 = vmatprep.subr.mxu0 0.0
          %566 = vmatpush1.msra.mxu0 0.0
          %567 = vmatprep.subr.mxu0 0.0
          %568 = vmatpush1.msra.mxu0 0.0
          %569 = vmatprep.subr.mxu0 0.0
          %570 = vmatpush1.msra.mxu0 0.0
          %571 = vmatprep.subr.mxu0 0.0
          %572 = vmatpush1.msra.mxu0 0.0
          %573 = vmatprep.subr.mxu0 0.0
          %574 = vmatpush1.msra.mxu0 0.0
          %575 = vmatprep.subr.mxu0 0.0
          %576 = vmatpush1.msra.mxu0 0.0
          %577 = vmatprep.subr.mxu0 0.0
          %578 = vmatpush1.msra.mxu0 0.0
          %579 = vmatprep.subr.mxu0 0.0
          %580 = vmatpush1.msra.mxu0 0.0
          %581 = vmatprep.subr.mxu0 0.0
          %582 = vmatpush1.msra.mxu0 0.0
          %583 = vmatprep.subr.mxu0 0.0
          %584 = vmatpush1.msra.mxu0 0.0
          %585 = vmatprep.subr.mxu0 0.0
          %586 = vmatpush1.msra.mxu0 0.0
          %587 = vmatprep.subr.mxu0 0.0
          %588 = vmatpush1.msra.mxu0 0.0
          %v589 = vand.u32 %v317, 4294901760
          %590 = vmatprep.subr.mxu0 %v589
          %v591 = vand.u32 %v316, 4294901760
          %592 = vmatpush1.msra.mxu0 %v591
          %593 = vmatprep.subr.mxu0 0.0
          %594 = vmatpush2.msra.mxu0 0.0
          %595 = vmatprep.subr.mxu0 0.0
          %596 = vmatpush2.msra.mxu0 0.0
          %597 = vmatprep.subr.mxu0 0.0
          %598 = vmatpush2.msra.mxu0 0.0
          %599 = vmatprep.subr.mxu0 0.0
          %600 = vmatpush2.msra.mxu0 0.0
          %601 = vmatprep.subr.mxu0 0.0
          %602 = vmatpush2.msra.mxu0 0.0
          %603 = vmatprep.subr.mxu0 0.0
          %604 = vmatpush2.msra.mxu0 0.0
          %605 = vmatprep.subr.mxu0 0.0
          %606 = vmatpush2.msra.mxu0 0.0
          %607 = vmatprep.subr.mxu0 0.0
          %608 = vmatpush2.msra.mxu0 0.0
          %609 = vmatprep.subr.mxu0 0.0
          %610 = vmatpush2.msra.mxu0 0.0
          %611 = vmatprep.subr.mxu0 0.0
          %612 = vmatpush2.msra.mxu0 0.0
          %613 = vmatprep.subr.mxu0 0.0
          %614 = vmatpush2.msra.mxu0 0.0
          %615 = vmatprep.subr.mxu0 0.0
          %616 = vmatpush2.msra.mxu0 0.0
          %617 = vmatprep.subr.mxu0 0.0
          %618 = vmatpush2.msra.mxu0 0.0
          %619 = vmatprep.subr.mxu0 0.0
          %620 = vmatpush2.msra.mxu0 0.0
          %621 = vmatprep.subr.mxu0 0.0
          %622 = vmatpush2.msra.mxu0 0.0
          %623 = vmatprep.subr.mxu0 0.0
          %624 = vmatpush2.msra.mxu0 0.0
          %625 = vmatprep.mubr.f32.mxu0 0.0
          %v626 = vand.u32 %v320, 4294901760
          %v627 = vsub.f32 %v320, %v626
          %v628 = vand.u32 %v627, 4294901760
          %629 = vmatmul.mubr.f32.gmra.mxu0 %v628
          %v630 = vpop.f32.mrf.mxu0
          %v631 = vadd.f32 %v555, %v630
          %v632 = vpop.f32.mrf.mxu0
          %v633 = vadd.f32 %v557, %v632
          %634 = vdwg.mxu0
          %635 = vmatprep.subr.mxu0 0.0
          %636 = vmatpush1.msra.mxu0 0.0
          %637 = vmatprep.subr.mxu0 0.0
          %638 = vmatpush1.msra.mxu0 0.0
          %639 = vmatprep.subr.mxu0 0.0
          %640 = vmatpush1.msra.mxu0 0.0
          %641 = vmatprep.subr.mxu0 0.0
          %642 = vmatpush1.msra.mxu0 0.0
          %643 = vmatprep.subr.mxu0 0.0
          %644 = vmatpush1.msra.mxu0 0.0
          %645 = vmatprep.subr.mxu0 0.0
          %646 = vmatpush1.msra.mxu0 0.0
          %647 = vmatprep.subr.mxu0 0.0
          %648 = vmatpush1.msra.mxu0 0.0
          %649 = vmatprep.subr.mxu0 0.0
          %650 = vmatpush1.msra.mxu0 0.0
          %651 = vmatprep.subr.mxu0 0.0
          %652 = vmatpush1.msra.mxu0 0.0
          %653 = vmatprep.subr.mxu0 0.0
          %654 = vmatpush1.msra.mxu0 0.0
          %655 = vmatprep.subr.mxu0 0.0
          %656 = vmatpush1.msra.mxu0 0.0
          %657 = vmatprep.subr.mxu0 0.0
          %658 = vmatpush1.msra.mxu0 0.0
          %659 = vmatprep.subr.mxu0 0.0
          %660 = vmatpush1.msra.mxu0 0.0
          %661 = vmatprep.subr.mxu0 0.0
          %662 = vmatpush1.msra.mxu0 0.0
          %663 = vmatprep.subr.mxu0 0.0
          %664 = vmatpush1.msra.mxu0 0.0
          %v665 = vand.u32 %v317, 4294901760
          %v666 = vsub.f32 %v317, %v665
          %v667 = vand.u32 %v666, 4294901760
          %668 = vmatprep.subr.mxu0 %v667
          %v669 = vand.u32 %v316, 4294901760
          %v670 = vsub.f32 %v316, %v669
          %v671 = vand.u32 %v670, 4294901760
          %672 = vmatpush1.msra.mxu0 %v671
          %673 = vmatprep.subr.mxu0 0.0
          %674 = vmatpush2.msra.mxu0 0.0
          %675 = vmatprep.subr.mxu0 0.0
          %676 = vmatpush2.msra.mxu0 0.0
          %677 = vmatprep.subr.mxu0 0.0
          %678 = vmatpush2.msra.mxu0 0.0
          %679 = vmatprep.subr.mxu0 0.0
          %680 = vmatpush2.msra.mxu0 0.0
          %681 = vmatprep.subr.mxu0 0.0
          %682 = vmatpush2.msra.mxu0 0.0
          %683 = vmatprep.subr.mxu0 0.0
          %684 = vmatpush2.msra.mxu0 0.0
          %685 = vmatprep.subr.mxu0 0.0
          %686 = vmatpush2.msra.mxu0 0.0
          %687 = vmatprep.subr.mxu0 0.0
          %688 = vmatpush2.msra.mxu0 0.0
          %689 = vmatprep.subr.mxu0 0.0
          %690 = vmatpush2.msra.mxu0 0.0
          %691 = vmatprep.subr.mxu0 0.0
          %692 = vmatpush2.msra.mxu0 0.0
          %693 = vmatprep.subr.mxu0 0.0
          %694 = vmatpush2.msra.mxu0 0.0
          %695 = vmatprep.subr.mxu0 0.0
          %696 = vmatpush2.msra.mxu0 0.0
          %697 = vmatprep.subr.mxu0 0.0
          %698 = vmatpush2.msra.mxu0 0.0
          %699 = vmatprep.subr.mxu0 0.0
          %700 = vmatpush2.msra.mxu0 0.0
          %701 = vmatprep.subr.mxu0 0.0
          %702 = vmatpush2.msra.mxu0 0.0
          %703 = vmatprep.subr.mxu0 0.0
          %704 = vmatpush2.msra.mxu0 0.0
          %705 = vmatprep.mubr.f32.mxu0 0.0
          %v706 = vand.u32 %v320, 4294901760
          %707 = vmatmul.mubr.f32.gmra.mxu0 %v706
          %v708 = vpop.f32.mrf.mxu0
          %v709 = vadd.f32 %v631, %v708
          %v710 = vpop.f32.mrf.mxu0
          %v711 = vadd.f32 %v633, %v710
          %712 = vdwg.mxu0
          %713 = vmatprep.subr.mxu0 0.0
          %714 = vmatpush1.msra.mxu0 0.0
          %715 = vmatprep.subr.mxu0 0.0
          %716 = vmatpush1.msra.mxu0 0.0
          %717 = vmatprep.subr.mxu0 0.0
          %718 = vmatpush1.msra.mxu0 0.0
          %719 = vmatprep.subr.mxu0 0.0
          %720 = vmatpush1.msra.mxu0 0.0
          %721 = vmatprep.subr.mxu0 0.0
          %722 = vmatpush1.msra.mxu0 0.0
          %723 = vmatprep.subr.mxu0 0.0
          %724 = vmatpush1.msra.mxu0 0.0
          %725 = vmatprep.subr.mxu0 0.0
          %726 = vmatpush1.msra.mxu0 0.0
          %727 = vmatprep.subr.mxu0 0.0
          %728 = vmatpush1.msra.mxu0 0.0
          %729 = vmatprep.subr.mxu0 0.0
          %730 = vmatpush1.msra.mxu0 0.0
          %731 = vmatprep.subr.mxu0 0.0
          %732 = vmatpush1.msra.mxu0 0.0
          %733 = vmatprep.subr.mxu0 0.0
          %734 = vmatpush1.msra.mxu0 0.0
          %735 = vmatprep.subr.mxu0 0.0
          %736 = vmatpush1.msra.mxu0 0.0
          %737 = vmatprep.subr.mxu0 0.0
          %738 = vmatpush1.msra.mxu0 0.0
          %739 = vmatprep.subr.mxu0 0.0
          %740 = vmatpush1.msra.mxu0 0.0
          %741 = vmatprep.subr.mxu0 0.0
          %742 = vmatpush1.msra.mxu0 0.0
          %v743 = vand.u32 %v317, 4294901760
          %744 = vmatprep.subr.mxu0 %v743
          %v745 = vand.u32 %v316, 4294901760
          %746 = vmatpush1.msra.mxu0 %v745
          %747 = vmatprep.subr.mxu0 0.0
          %748 = vmatpush2.msra.mxu0 0.0
          %749 = vmatprep.subr.mxu0 0.0
          %750 = vmatpush2.msra.mxu0 0.0
          %751 = vmatprep.subr.mxu0 0.0
          %752 = vmatpush2.msra.mxu0 0.0
          %753 = vmatprep.subr.mxu0 0.0
          %754 = vmatpush2.msra.mxu0 0.0
          %755 = vmatprep.subr.mxu0 0.0
          %756 = vmatpush2.msra.mxu0 0.0
          %757 = vmatprep.subr.mxu0 0.0
          %758 = vmatpush2.msra.mxu0 0.0
          %759 = vmatprep.subr.mxu0 0.0
          %760 = vmatpush2.msra.mxu0 0.0
          %761 = vmatprep.subr.mxu0 0.0
          %762 = vmatpush2.msra.mxu0 0.0
          %763 = vmatprep.subr.mxu0 0.0
          %764 = vmatpush2.msra.mxu0 0.0
          %765 = vmatprep.subr.mxu0 0.0
          %766 = vmatpush2.msra.mxu0 0.0
          %767 = vmatprep.subr.mxu0 0.0
          %768 = vmatpush2.msra.mxu0 0.0
          %769 = vmatprep.subr.mxu0 0.0
          %770 = vmatpush2.msra.mxu0 0.0
          %771 = vmatprep.subr.mxu0 0.0
          %772 = vmatpush2.msra.mxu0 0.0
          %773 = vmatprep.subr.mxu0 0.0
          %774 = vmatpush2.msra.mxu0 0.0
          %775 = vmatprep.subr.mxu0 0.0
          %776 = vmatpush2.msra.mxu0 0.0
          %777 = vmatprep.subr.mxu0 0.0
          %778 = vmatpush2.msra.mxu0 0.0
          %779 = vmatprep.mubr.f32.mxu0 0.0
          %v780 = vand.u32 %v320, 4294901760
          %781 = vmatmul.mubr.f32.gmra.mxu0 %v780
          %v782 = vpop.f32.mrf.mxu0
          %v783 = vadd.f32 %v709, %v782
          %v784 = vpop.f32.mrf.mxu0
          %v785 = vadd.f32 %v711, %v784
          %786 = vdwg.mxu0
          %v787 = vld [vmem:[#allocation2] sm:$0xff]
          %v788 = vmax.f32 %v783, %v785
          %789 = vmax.xlane.f32.xlu0 %v788
          %v790 = vpop.xlane.xlu0 %789
          %v791 = vmax.f32 %v787, %v790
          %v792 = vsub.f32 %v787, %v791
          %v793 = vmul.f32 %v792, 1.442695
          %v794 = vpow.pop %v793
          %796 = vset.pattern.permute.xlu0 0
          %797 = vperm.xlu0 %796, %v791
          %v798 = vpop.permute.xlu0 %797
          %v800 = vsub.f32 %v783, %v798
          %v801 = vsub.f32 %v785, %v798
          %v802 = vmul.f32 %v800, 1.442695
          %v803 = vpow.pop %v802
          %v804 = vmul.f32 %v801, 1.442695
          %v805 = vpow.pop %v804
          %v806 = vld [vmem:[%s292] sm:$0x77]
          %v807 = vld [vmem:[#allocation3] sm:$0xff]
          %v808 = vmul.f32 %v794, %v807
          %v809 = vadd.f32 %v803, %v805
          %810 = vadd.xlane.f32.xlu0 %v809
          %v811 = vpop.xlane.xlu0 %810
          %v812 = vadd.f32 %v808, %v811
          %vm813 = vcmask 7168
          %814 = vst.msk [vmem:[#allocation3] sm:$0xff] %vm813, %v812
          %v815 = vld [vmem:[#allocation4] sm:$0xff]
          %v816 = vmul.f32 %v794, %v815
          %v818 = vlaneseq
          %v819 = vshrl.u32 %v818, 7
          %v820 = vsub.s32 0, %v819
          %v821 = vrot.slane %v806, %v820
          %v822 = vlaneseq
          %v823 = vshrl.u32 %v822, 7
          %v824 = vsub.s32 4, %v823
          %v825 = vrot.slane %v806, %v824
          %v828 = vlaneseq
          %v829 = vshrl.u32 %v828, 7
          %v830 = vsub.s32 0, %v829
          %v831 = vrot.slane %v821, %v830
          %v832 = vlaneseq
          %v833 = vshrl.u32 %v832, 7
          %v834 = vsub.s32 0, %v833
          %v835 = vrot.slane %v825, %v834
          %v836 = vmul.f32 %v803, %v831
          %v837 = vmul.f32 %v805, %v835
          %v838 = vadd.f32 %v836, %v837
          %839 = vadd.xlane.f32.xlu0 %v838
          %v840 = vpop.xlane.xlu0 %839
          %v841 = vadd.f32 %v816, %v840
          %842 = vst.msk [vmem:[#allocation4] sm:$0xff] %vm813, %v841
          %v843 = vld [vmem:[#allocation5] sm:$0xff]
          %v844 = vmul.f32 %v794, %v843
          %v845 = vlaneseq
          %v846 = vshrl.u32 %v845, 7
          %v847 = vsub.s32 1, %v846
          %v848 = vrot.slane %v806, %v847
          %v849 = vlaneseq
          %v850 = vshrl.u32 %v849, 7
          %v851 = vsub.s32 5, %v850
          %v852 = vrot.slane %v806, %v851
          %v855 = vlaneseq
          %v856 = vshrl.u32 %v855, 7
          %v857 = vsub.s32 1, %v856
          %v858 = vrot.slane %v848, %v857
          %v859 = vlaneseq
          %v860 = vshrl.u32 %v859, 7
          %v861 = vsub.s32 1, %v860
          %v862 = vrot.slane %v852, %v861
          %v863 = vmul.f32 %v803, %v858
          %v864 = vmul.f32 %v805, %v862
          %v865 = vadd.f32 %v863, %v864
          %866 = vadd.xlane.f32.xlu0 %v865
          %v867 = vpop.xlane.xlu0 %866
          %v868 = vadd.f32 %v844, %v867
          %869 = vst.msk [vmem:[#allocation5] sm:$0xff] %vm813, %v868
          %v870 = vld [vmem:[#allocation6] sm:$0xff]
          %v871 = vmul.f32 %v794, %v870
          %v872 = vlaneseq
          %v873 = vshrl.u32 %v872, 7
          %v874 = vsub.s32 2, %v873
          %v875 = vrot.slane %v806, %v874
          %v876 = vlaneseq
          %v877 = vshrl.u32 %v876, 7
          %v878 = vsub.s32 6, %v877
          %v879 = vrot.slane %v806, %v878
          %v882 = vlaneseq
          %v883 = vshrl.u32 %v882, 7
          %v884 = vsub.s32 2, %v883
          %v885 = vrot.slane %v875, %v884
          %v886 = vlaneseq
          %v887 = vshrl.u32 %v886, 7
          %v888 = vsub.s32 2, %v887
          %v889 = vrot.slane %v879, %v888
          %v890 = vmul.f32 %v803, %v885
          %v891 = vmul.f32 %v805, %v889
          %v892 = vadd.f32 %v890, %v891
          %893 = vadd.xlane.f32.xlu0 %v892
          %v894 = vpop.xlane.xlu0 %893
          %v895 = vadd.f32 %v871, %v894
          %896 = vst.msk [vmem:[#allocation6] sm:$0xff] %vm813, %v895
          %897 = vst.msk [vmem:[#allocation2] sm:$0xff] %vm813, %v791
          %p898 = scmp.eq.s32.totalorder %s31, 1
          // Predicated region
          $region53: #{pose_regression_forward.1} parent=47 // pred_check
            %p899 = pneg %p898
          $region54: #{pose_regression_forward.1} parent=47 // pred_check_branch
            %901 = sbr.rel (%p899) target = $region56
          $region55: #{pose_regression_forward.1} parent=47 // pred_region
            %v902 = vld [vmem:[#allocation3] sm:$0xff]
            %v903 = vrcp.pop %v902
            %v904 = vld [vmem:[#allocation4] sm:$0xff]
            %v905 = vmul.f32 %v904, %v903
            %s906 = smul.u32 %s30, 128
            %s907 = sld [smem:[#allocation12 + %s906]]
            %v908 = vstv %s907
            %v909 = vadd.f32 %v905, %v908
            %v910 = vld [vmem:[#allocation5] sm:$0xff]
            %v911 = vmul.f32 %v910, %v903
            %s912 = sadd.s32 %s906, 1
            %s913 = sld [smem:[#allocation12 + %s912]]
            %v914 = vstv %s913
            %v915 = vadd.f32 %v911, %v914
            %v916 = vld [vmem:[#allocation6] sm:$0xff]
            %v917 = vmul.f32 %v916, %v903
            %s918 = sadd.s32 %s906, 2
            %s919 = sld [smem:[#allocation12 + %s918]]
            %v920 = vstv %s919
            %v921 = vadd.f32 %v917, %v920
            %v922 = vlaneseq
            %v923 = vand.u32 %v922, 127
            %vm924 = vcmp.eq.s32.totalorder %v923, 0
            %vm925 = vcmp.eq.s32.totalorder %v923, 1
            %vm926 = vcmp.eq.s32.totalorder %v923, 2
            %928 = vset.pattern.permute.xlu0 0
            %929 = vperm.xlu0 %928, %v921
            %v930 = vpop.permute.xlu0 %929
            %v932 = vsel %vm926, %v930, 0.0
            %934 = vset.pattern.permute.xlu0 0
            %935 = vperm.xlu0 %934, %v915
            %v936 = vpop.permute.xlu0 %935
            %v938 = vsel %vm925, %v936, %v932
            %940 = vset.pattern.permute.xlu0 0
            %941 = vperm.xlu0 %940, %v909
            %v942 = vpop.permute.xlu0 %941
            %v944 = vsel %vm924, %v942, %v938
            %945 = vst [vmem:[%s299] sm:$0xff] %v944
          $region56: #{pose_regression_forward.1} parent=47 // pred_fallthru
            _
        $region48: #{pose_regression_forward.1} parent=35 // pred_fallthru
          _
        %s946 = sld [smem:[#allocation8 + %s30]]
        %p947 = scmp.eq.s32.totalorder %s946, 0
        %p948 = scmp.eq.s32.totalorder %s31, 1
        %p949 = pnand %p947, %p948
        %p950 = pneg %p949
        // Predicated region
        $region57: #{pose_regression_forward.1} parent=35 // pred_check
          _
        $region58: #{pose_regression_forward.1} parent=35 // pred_check_branch
          %952 = sbr.rel (%p949) target = $region60
        $region59: #{pose_regression_forward.1} parent=35 // pred_region
          %953 = vst [vmem:[%s299] sm:$0xff] 0.0
        $region60: #{pose_regression_forward.1} parent=35 // pred_fallthru
          _
        %p954 = scmp.lt.s32.totalorder %s30, 1
        %s955 = scalar_select %p954, %s30, 1
        %s956 = smul.addr %s955, 8
        %s957 = scalar_lea.vmem %s5, %s956
        // Predicated region
        $region61: #{pose_regression_forward.1} parent=35 // pred_check
          %p958 = pneg %p162
        $region62: #{pose_regression_forward.1} parent=35 // pred_check_branch
          %960 = sbr.rel (%p958) target = $region64
        $region63: #{pose_regression_forward.1} parent=35 // pred_region
          _
        $region64: #{pose_regression_forward.1} parent=35 // pred_fallthru
          _
      $region36: #{pose_regression_forward.1} parent=5 // pred_fallthru
        _
      %p961 = scmp.le.s32.totalorder 2, %s21
      // Predicated region
      $region65: #{pose_regression_forward.1} parent=5 // pred_check
        %p962 = pneg %p961
      $region66: #{pose_regression_forward.1} parent=5 // pred_check_branch
        %964 = sbr.rel (%p962) target = $region68
      $region67: #{pose_regression_forward.1} parent=5 // pred_region
        %s965 = ssub.s32 %s21, 2
        // Predicated region
        $region69: #{pose_regression_forward.1} parent=67 // pred_check
          %p966 = pneg %p168
        $region70: #{pose_regression_forward.1} parent=67 // pred_check_branch
          %968 = sbr.rel (%p966) target = $region72
        $region71: #{pose_regression_forward.1} parent=67 // pred_region
          %p969 = scmp.lt.s32.totalorder %s32, 1
          %s970 = scalar_select %p969, %s32, 1
          %s971 = smul.addr %s970, 8
          %s972 = scalar_lea.vmem %s5, %s971
        $region72: #{pose_regression_forward.1} parent=67 // pred_fallthru
          _
      $region68: #{pose_regression_forward.1} parent=5 // pred_fallthru
        _
    $region6: #{pose_regression_forward.1} parent=1 // loop_footer
      %s25 = sadd.s32 1, %s21
    $region7: #{pose_regression_forward.1} parent=1 // loop_footer_branch
      %20 = sbr.rel target = $region3
    $region8: #{pose_regression_forward.1} parent=1 // loop_exit
      _
    %973 = vsyncpa [#allocation10], 1
    %s974 = scalar_lea.sflag [#allocation10], 1
    %975 = vsyncpa %s974, 1
    %976 = vsyncpa [#allocation11], 1
    %s977 = scalar_lea.sflag [#allocation11], 1
    %978 = vsyncpa %s977, 1

</llo_original>
